<compile_context>
chip_gen: v7x
topology: tpu7x:2x2x1
jax: 0.10.0
libtpu: 0.0.40
codegen_flags: <defaults>
</compile_context>

<pallas_src>
import functools

import numpy as np
import jax
import jax.numpy as jnp
from jax.experimental import pallas as pl
from jax.experimental.pallas import tpu as pltpu


def _round_up(x, m):
    return (x + m - 1) // m * m


def _vmem_limit_bytes():
    """Per-generation VMEM budget (v5e/v6e: 128 MiB physical, v7x: 64 MiB)."""
    cap = 64 * 1024 * 1024
    try:
        info = pltpu.get_tpu_info()
        cap = int(getattr(info, "vmem_capacity_bytes", cap))
    except Exception:
        pass
    # use at most half of physical VMEM, never more than 64 MiB
    return max(16 * 1024 * 1024, min(cap // 2, 64 * 1024 * 1024))


# ----------------------- fused kernel (gather + FM + linear) ----------------------- #

def _fm_fused_kernel(idx_ref, tab_ref, b_ref, o_ref, h_ref, *,
                     embed_dim, field_pads, field_offs):
    """One batch tile, batch on lanes.

    idx_ref : (F, TB)   int32 VMEM  - per-field LOCAL 0-based ids
    tab_ref : (2, M, K) bf16  VMEM  - hi/lo split stacked table (K = padded vocab):
              rows [0:D] = emb.T (at padded per-field column offsets),
              row D = per-row squared norm, row D+1 = linear weight.
              Same block every grid step -> stays resident in VMEM.
    b_ref   : (1, 1)    f32   SMEM  - linear bias
    o_ref   : (1, TB)   f32   VMEM  - lane-dense output
    h_ref   : (K, TB)   f32   VMEM scratch - one-hot selection matrix
    """
    tb = idx_ref.shape[1]
    idx = idx_ref[...]                                               # (F, TB)

    # Per-field one-hot blocks written into disjoint, sublane-aligned row ranges:
    # one compare per output element (no full-vocab compare per field, no add chain).
    for f, (dp, off) in enumerate(zip(field_pads, field_offs)):
        iota = jax.lax.broadcasted_iota(jnp.int32, (dp, tb), 0)      # (dp, TB)
        h_ref[off:off + dp, :] = (iota == idx[f:f + 1, :]).astype(jnp.float32)

    h = h_ref[...].astype(jnp.bfloat16)                              # {0,1} -> exact

    # MXU gather: g[r, b] = sum over the F selected rows of table row r.
    # hi/lo bf16 split: ~f32 accuracy with 2 bf16 passes (vs 6 for f32 HIGHEST).
    g = (jnp.dot(tab_ref[0], h, preferred_element_type=jnp.float32) +
         jnp.dot(tab_ref[1], h, preferred_element_type=jnp.float32))  # (M, TB)

    s = g[0:embed_dim]                        # sum_f e_f             (D, TB)
    sq = g[embed_dim:embed_dim + 1]           # sum_f ||e_f||^2       (1, TB)
    lin = g[embed_dim + 1:embed_dim + 2]      # sum_f w_f             (1, TB)

    fm = 0.5 * (jnp.sum(s * s, axis=0, keepdims=True) - sq)          # (1, TB)
    o_ref[...] = lin + fm + b_ref[0, 0]


def fm_drm_fused(idx_local, tab2, bias, *, embed_dim, field_pads, field_offs,
                 tile_b, vmem_limit):
    """idx_local: (B, F) int32 local per-field ids; tab2: (2, M, K) bf16; bias: (1,1)."""
    B, F = idx_local.shape
    b_pad = _round_up(B, tile_b)
    idx_t = jnp.pad(idx_local.T.astype(jnp.int32), ((0, 0), (0, b_pad - B)))

    total_pad = tab2.shape[2]
    kernel = functools.partial(_fm_fused_kernel, embed_dim=embed_dim,
                               field_pads=tuple(field_pads),
                               field_offs=tuple(field_offs))
    out = pl.pallas_call(
        kernel,
        out_shape=jax.ShapeDtypeStruct((1, b_pad), jnp.float32),
        grid_spec=pltpu.PrefetchScalarGridSpec(
            num_scalar_prefetch=0,
            grid=(b_pad // tile_b,),
            in_specs=[
                pl.BlockSpec((F, tile_b), lambda i: (0, i)),           # batch on lanes
                pl.BlockSpec(tab2.shape, lambda i: (0, 0, 0)),         # VMEM-resident table
                pl.BlockSpec(memory_space=pltpu.MemorySpace.SMEM),     # bias scalar
            ],
            out_specs=pl.BlockSpec((1, tile_b), lambda i: (0, i)),     # lane-dense store
            scratch_shapes=[pltpu.VMEM((total_pad, tile_b), jnp.float32)],
        ),
        compiler_params=pltpu.CompilerParams(
            dimension_semantics=("parallel",),
            vmem_limit_bytes=vmem_limit),
    )(idx_t, tab2, bias)
    return out[0, :B]


# ------------------- fallback kernel (gather in XLA, FM in Pallas) ------------------ #

def _fm_kernel_bfd(e_ref, w_ref, b_ref, o_ref):
    """e_ref: (TB, F, D) f32, w_ref: (TB, F) f32, b_ref: (1,1) SMEM, o_ref: (TB, 1)."""
    e = e_ref[...]                                   # (TB, F, D) natural take() layout
    w = w_ref[...]                                   # (TB, F)
    num_fields = e.shape[1]

    e0 = e[:, 0, :]
    s = e0
    q = e0 * e0
    lin = w[:, 0:1]
    for f in range(1, num_fields):                   # F is tiny & static -> unrolled
        ef = e[:, f, :]
        s = s + ef
        q = q + ef * ef
        lin = lin + w[:, f:f + 1]

    fm = 0.5 * jnp.sum(s * s - q, axis=1, keepdims=True)   # (TB, 1)
    o_ref[...] = lin + fm + b_ref[0, 0]


def fm_drm_unfused(e, w, bias, *, tile_b, vmem_limit):
    """e: (B_pad, F, D) f32, w: (B_pad, F) f32 -> (B_pad, 1) f32."""
    b_pad, F, D = e.shape
    return pl.pallas_call(
        _fm_kernel_bfd,
        out_shape=jax.ShapeDtypeStruct((b_pad, 1), jnp.float32),
        grid_spec=pltpu.PrefetchScalarGridSpec(
            num_scalar_prefetch=0,
            grid=(b_pad // tile_b,),
            in_specs=[
                pl.BlockSpec((tile_b, F, D), lambda i: (i, 0, 0)),
                pl.BlockSpec((tile_b, F), lambda i: (i, 0)),
                pl.BlockSpec(memory_space=pltpu.MemorySpace.SMEM),
            ],
            out_specs=pl.BlockSpec((tile_b, 1), lambda i: (i, 0)),
        ),
        compiler_params=pltpu.CompilerParams(
            dimension_semantics=("parallel",),
            vmem_limit_bytes=vmem_limit),
    )(e, w, bias)


# ----------------------------------- FM_DRM model ----------------------------------- #

class FMDRMJax:
    """JAX/Pallas re-implementation of FM_DRM.forward (inference path)."""

    # 128 MiB VMEM parts (v5e/v6e) comfortably hold much larger fused tables;
    # the per-tile one-hot scratch is capped separately in _tile().
    FUSE_VOCAB_LIMIT = 8192

    def __init__(self, field_dims, embed_dim, key):
        self.field_dims = tuple(int(d) for d in field_dims)
        self.embed_dim = int(embed_dim)
        self.total = sum(self.field_dims)
        offsets_np = np.array((0, *np.cumsum(self.field_dims)[:-1]), dtype=np.int32)
        self.offsets = jnp.asarray(offsets_np)

        k_emb, k_lin = jax.random.split(key)
        # FeaturesEmbedding: xavier-uniform (total, embed_dim) table
        limit = float(np.sqrt(6.0 / (self.total + self.embed_dim)))
        self.emb_table = jax.random.uniform(
            k_emb, (self.total, self.embed_dim), jnp.float32, -limit, limit)
        # FeaturesLinear: nn.Embedding(total, 1) weights + zero bias
        self.lin_table = jax.random.normal(k_lin, (self.total, 1), jnp.float32)
        self.lin_bias = jnp.zeros((1, 1), jnp.float32)

        # ------- fused-path table: hi/lo bf16 split, (2, M, K) -------
        # columns: per-field vocab ranges padded to multiples of 8 sublanes
        # rows:    [0:D] = emb.T, [D] = per-row ||e||^2, [D+1] = linear weight
        self.field_pads = tuple(_round_up(d, 8) for d in self.field_dims)
        self.field_offs_pad = tuple(
            int(v) for v in np.concatenate(([0], np.cumsum(self.field_pads)[:-1])))
        self.total_pad = int(sum(self.field_pads))
        self.m_pad = _round_up(self.embed_dim + 2, 16)

        D = self.embed_dim
        tab = jnp.zeros((self.m_pad, self.total_pad), jnp.float32)
        for f, d in enumerate(self.field_dims):
            src = int(offsets_np[f])
            dst = self.field_offs_pad[f]
            emb_f = self.emb_table[src:src + d]                         # (d, D)
            tab = tab.at[0:D, dst:dst + d].set(emb_f.T)
            tab = tab.at[D, dst:dst + d].set(jnp.sum(emb_f * emb_f, axis=1))
            tab = tab.at[D + 1, dst:dst + d].set(self.lin_table[src:src + d, 0])
        tab_hi = tab.astype(jnp.bfloat16)
        tab_lo = (tab - tab_hi.astype(jnp.float32)).astype(jnp.bfloat16)
        self.tab2 = jnp.stack([tab_hi, tab_lo], axis=0)                 # (2, M, K) bf16

        self.vmem_limit = _vmem_limit_bytes()

    def _tile(self, batch, fused):
        b128 = _round_up(max(int(batch), 1), 128)
        tile = min(b128, 4096)
        if fused:
            # keep the (total_pad, tile) one-hot scratch <= ~1M f32 elements (~4 MiB)
            cap = max(128, ((1 << 20) // max(self.total_pad, 1)) // 128 * 128)
            tile = min(tile, cap)
        # v7x megacore: give the 'parallel' batch axis >= 2 grid steps when possible
        if b128 >= 256 and tile >= b128:
            tile = max(128, (b128 // 2) // 128 * 128)
        return tile

    def forward(self, x, fuse_gather=None):
        """x: int array (batch, num_fields), 1-based ids (forward does x - 1)."""
        x = x.astype(jnp.int32) - 1                          # local 0-based per-field ids
        if fuse_gather is None:
            fuse_gather = self.total_pad <= self.FUSE_VOCAB_LIMIT
        B, F = x.shape
        tile = self._tile(B, fuse_gather)

        if fuse_gather:
            return fm_drm_fused(x, self.tab2, self.lin_bias,
                                embed_dim=self.embed_dim,
                                field_pads=self.field_pads,
                                field_offs=self.field_offs_pad,
                                tile_b=tile, vmem_limit=self.vmem_limit)

        # Fallback: gather in XLA in its natural (B, F, D) layout (no transpose /
        # batch-to-lanes glue), FM reduction in Pallas.
        # TODO(synk): for huge vocabularies a per-row DMA gather inside the kernel
        # would remove this HBM round trip; here the gather stays in XLA glue.
        idx = x + self.offsets[None, :]                      # (B, F) global rows
        b_pad = _round_up(B, tile)
        idx_p = jnp.pad(idx, ((0, b_pad - B), (0, 0)))       # pad with row 0 (valid)
        e = jnp.take(self.emb_table, idx_p, axis=0)          # (b_pad, F, D)
        w = jnp.take(self.lin_table, idx_p, axis=0)[..., 0]  # (b_pad, F)
        out = fm_drm_unfused(e, w, self.lin_bias, tile_b=tile,
                             vmem_limit=self.vmem_limit)
        return out[:B, 0]


# Pure-JAX reference for correctness checking.
def reference_forward(model, x):
    x = x.astype(jnp.int32) - 1
    idx = x + model.offsets[None, :]
    e = jnp.take(model.emb_table, idx, axis=0)
    w = jnp.take(model.lin_table, idx, axis=0)[..., 0]
    linear = jnp.sum(w, axis=1) + model.lin_bias[0, 0]
    square_of_sum = jnp.sum(e, axis=1) ** 2
    sum_of_square = jnp.sum(e ** 2, axis=1)
    fm = 0.5 * jnp.sum(square_of_sum - sum_of_square, axis=1)
    return linear + fm


# --------------------------------------- main --------------------------------------- #

if __name__ == "__main__":
    key = jax.random.PRNGKey(0)
    k_model, k_u, k_i = jax.random.split(key, 3)

    field_dims = [10, 12]      # [num_users, num_items]
    embed_dim = 32
    batch = 16                 # not required to be a multiple of the tile

    model = FMDRMJax(field_dims, embed_dim, k_model)

    # 1-based ids, as the PyTorch forward subtracts 1.
    users = jax.random.randint(k_u, (batch,), 1, field_dims[0] + 1, dtype=jnp.int32)
    items = jax.random.randint(k_i, (batch,), 1, field_dims[1] + 1, dtype=jnp.int32)
    x = jnp.stack([users, items], axis=1)     # (batch, num_fields)

    ref = jax.block_until_ready(reference_forward(model, x))

    out_fused = jax.block_until_ready(model.forward(x))                      # fused gather
    out_plain = jax.block_until_ready(model.forward(x, fuse_gather=False))   # fallback path

    assert out_fused.shape == (batch,)
    assert out_plain.shape == (batch,)
    # Fused path uses a hi/lo bf16 table split on the MXU -> slightly looser tolerance.
    np.testing.assert_allclose(np.asarray(out_fused), np.asarray(ref), rtol=2e-4, atol=2e-4)
    np.testing.assert_allclose(np.asarray(out_plain), np.asarray(ref), rtol=1e-5, atol=1e-5)

    # TODO(synk): calculate_loss / DRMLoss use Python-dict-driven ragged user/item
    # re-indexing with no static-shape Pallas equivalent; only the forward hot path
    # is implemented as a kernel.
    print("KERNEL_OK")
</pallas_src>

<mosaic_0001>
module attributes {stable_mosaic.version = 11 : i64} {
  func.func @_fm_fused_kernel(%arg0: i32, %arg1: memref<2x128xi32, #tpu.memory_space<vmem>>, %arg2: memref<2x48x32xbf16, #tpu.memory_space<vmem>>, %arg3: memref<1x1xf32, #tpu.memory_space<smem>>, %arg4: memref<1x128xf32, #tpu.memory_space<vmem>>, %arg5: memref<32x128xf32, #tpu.memory_space<vmem>>) attributes {dimension_semantics = [#tpu.dimension_semantics<parallel>], iteration_bounds = array<i64: 1>, scalar_prefetch = 0 : i64, scratch_operands = 1 : i64, tpu.core_type = #tpu.core_type<tc>, window_params = [{transform_indices = @transform_0, window_bounds = array<i64: 2, 128>}, {pipeline_mode = #tpu.pipeline_mode<synchronous>, transform_indices = @transform_1, window_bounds = array<i64: 2, 48, 32>}, {transform_indices = @transform_2, window_bounds = array<i64: 1, 1>}, {transform_indices = @transform_3, window_bounds = array<i64: 1, 128>}]} {
    %c0 = arith.constant 0 : index
    %c0_0 = arith.constant 0 : index
    %0 = vector.load %arg1[%c0, %c0_0] : memref<2x128xi32, #tpu.memory_space<vmem>>, vector<2x128xi32>
    %1 = tpu.iota {dimensions = array<i32: 0>} : vector<16x128xi32>
    %2 = vector.extract_strided_slice %0 {offsets = [0, 0], sizes = [1, 128], strides = [1, 1]} : vector<2x128xi32> to vector<1x128xi32>
    %3 = vector.broadcast %2 : vector<1x128xi32> to vector<16x128xi32>
    %4 = arith.cmpi eq, %1, %3 : vector<16x128xi32>
    %5 = arith.extui %4 : vector<16x128xi1> to vector<16x128xi32>
    %6 = arith.sitofp %5 : vector<16x128xi32> to vector<16x128xf32>
    %c0_1 = arith.constant 0 : index
    %c0_2 = arith.constant 0 : index
    %7 = vector.load %arg5[%c0_1, %c0_2] : memref<32x128xf32, #tpu.memory_space<vmem>>, vector<16x128xf32>
    tpu.vector_store %arg5[%c0_1, %c0_2], %6 {strides = array<i32>} : memref<32x128xf32, #tpu.memory_space<vmem>>, vector<16x128xf32>,
    %8 = tpu.iota {dimensions = array<i32: 0>} : vector<16x128xi32>
    %9 = vector.extract_strided_slice %0 {offsets = [1, 0], sizes = [1, 128], strides = [1, 1]} : vector<2x128xi32> to vector<1x128xi32>
    %10 = vector.broadcast %9 : vector<1x128xi32> to vector<16x128xi32>
    %11 = arith.cmpi eq, %8, %10 : vector<16x128xi32>
    %12 = arith.extui %11 : vector<16x128xi1> to vector<16x128xi32>
    %13 = arith.sitofp %12 : vector<16x128xi32> to vector<16x128xf32>
    %c16 = arith.constant 16 : index
    %c0_3 = arith.constant 0 : index
    %14 = vector.load %arg5[%c16, %c0_3] : memref<32x128xf32, #tpu.memory_space<vmem>>, vector<16x128xf32>
    tpu.vector_store %arg5[%c16, %c0_3], %13 {strides = array<i32>} : memref<32x128xf32, #tpu.memory_space<vmem>>, vector<16x128xf32>,
    %c0_4 = arith.constant 0 : index
    %c0_5 = arith.constant 0 : index
    %15 = vector.load %arg5[%c0_4, %c0_5] : memref<32x128xf32, #tpu.memory_space<vmem>>, vector<32x128xf32>
    %16 = arith.truncf %15 : vector<32x128xf32> to vector<32x128xbf16>
    %c0_6 = arith.constant 0 : index
    %c0_7 = arith.constant 0 : index
    %c0_8 = arith.constant 0 : index
    %17 = vector.load %arg2[%c0_6, %c0_7, %c0_8] : memref<2x48x32xbf16, #tpu.memory_space<vmem>>, vector<1x48x32xbf16>
    %18 = vector.shape_cast %17 : vector<1x48x32xbf16> to vector<48x32xbf16>
    %cst = arith.constant dense<0.000000e+00> : vector<48x128xf32>
    %19 = tpu.matmul %18, %16, %cst {dimension_numbers = #tpu.dot_dimension_numbers<[1], [0], [0], [1], [0, 0, 1, 1], [], []>} : vector<48x32xbf16>, vector<32x128xbf16>, vector<48x128xf32> -> vector<48x128xf32>
    %c1 = arith.constant 1 : index
    %c0_9 = arith.constant 0 : index
    %c0_10 = arith.constant 0 : index
    %20 = vector.load %arg2[%c1, %c0_9, %c0_10] : memref<2x48x32xbf16, #tpu.memory_space<vmem>>, vector<1x48x32xbf16>
    %21 = vector.shape_cast %20 : vector<1x48x32xbf16> to vector<48x32xbf16>
    %cst_11 = arith.constant dense<0.000000e+00> : vector<48x128xf32>
    %22 = tpu.matmul %21, %16, %cst_11 {dimension_numbers = #tpu.dot_dimension_numbers<[1], [0], [0], [1], [0, 0, 1, 1], [], []>} : vector<48x32xbf16>, vector<32x128xbf16>, vector<48x128xf32> -> vector<48x128xf32>
    %23 = arith.addf %19, %22 : vector<48x128xf32>
    %24 = vector.extract_strided_slice %23 {offsets = [0, 0], sizes = [32, 128], strides = [1, 1]} : vector<48x128xf32> to vector<32x128xf32>
    %25 = vector.extract_strided_slice %23 {offsets = [32, 0], sizes = [1, 128], strides = [1, 1]} : vector<48x128xf32> to vector<1x128xf32>
    %26 = vector.extract_strided_slice %23 {offsets = [33, 0], sizes = [1, 128], strides = [1, 1]} : vector<48x128xf32> to vector<1x128xf32>
    %27 = arith.mulf %24, %24 : vector<32x128xf32>
    %cst_12 = arith.constant dense<0.000000e+00> : vector<128xf32>
    %28 = vector.multi_reduction <add>, %27, %cst_12 [0] : vector<32x128xf32> to vector<128xf32>
    %29 = vector.shape_cast %28 : vector<128xf32> to vector<1x128xf32>
    %30 = arith.subf %29, %25 : vector<1x128xf32>
    %cst_13 = arith.constant 5.000000e-01 : f32
    %31 = vector.broadcast %cst_13 : f32 to vector<1x128xf32>
    %32 = arith.mulf %31, %30 : vector<1x128xf32>
    %33 = arith.addf %26, %32 : vector<1x128xf32>
    %c0_14 = arith.constant 0 : index
    %c0_15 = arith.constant 0 : index
    %34 = memref.load %arg3[%c0_14, %c0_15] : memref<1x1xf32, #tpu.memory_space<smem>>
    %35 = vector.broadcast %34 : f32 to vector<1x128xf32>
    %36 = arith.addf %33, %35 : vector<1x128xf32>
    %c0_16 = arith.constant 0 : index
    %c0_17 = arith.constant 0 : index
    %37 = vector.load %arg4[%c0_16, %c0_17] : memref<1x128xf32, #tpu.memory_space<vmem>>, vector<1x128xf32>
    tpu.vector_store %arg4[%c0_16, %c0_17], %36 {strides = array<i32>} : memref<1x128xf32, #tpu.memory_space<vmem>>, vector<1x128xf32>,
    return
  }
  func.func @transform_0(%arg0: i32) -> (i32, i32) {
    %c0_i32 = arith.constant 0 : i32
    %c0_i32_0 = arith.constant 0 : i32
    return %c0_i32, %arg0 : i32, i32
  }
  func.func @transform_1(%arg0: i32) -> (i32, i32, i32) {
    %c0_i32 = arith.constant 0 : i32
    %c0_i32_0 = arith.constant 0 : i32
    %c0_i32_1 = arith.constant 0 : i32
    %c0_i32_2 = arith.constant 0 : i32
    return %c0_i32, %c0_i32_0, %c0_i32_1 : i32, i32, i32
  }
  func.func @transform_2(%arg0: i32) -> (i32, i32) {
    %c0_i32 = arith.constant 0 : i32
    %c0_i32_0 = arith.constant 0 : i32
    %c0_i32_1 = arith.constant 0 : i32
    return %c0_i32, %c0_i32_0 : i32, i32
  }
  func.func @transform_3(%arg0: i32) -> (i32, i32) {
    %c0_i32 = arith.constant 0 : i32
    %c0_i32_0 = arith.constant 0 : i32
    return %c0_i32, %arg0 : i32, i32
  }
}

</mosaic_0001>

<llo_original>
// kernel: tpu_custom_call.1
$region0: #{tpu_custom_call.1}
  #allocation0 [shape = 'u32[]', space=smem, size = 0x4, offset = 0x4, fixed_abs, tag = 'smem constant byte address 0x4 - core index']
  #allocation1 [shape = 'u32[144,128]{1,0:T(1,128)}', space=vmem, size = 0x12000, scoped, tag = 'internal scratch']
  #allocation2 [shape = 'f32[32,128]{1,0:T(8,128)}', space=vmem, size = 0x4000, scoped, tag = 'scratch operand']
  #allocation3 [shape = 'f32[1,1]{1,0:T(1,128)S(6)}', space=smem, size = 0x200, scoped, tag = 'scoped memory for tpu_custom_call.1']
  %s0 = inlined_call_operand.vmem [shape: s32[2,128], index: 0, kind: input, shape index: {}]
  %s1 = inlined_call_operand.vmem [shape: bf16[2,48,32], index: 1, kind: input, shape index: {}]
  %s2 = inlined_call_operand.<no memory space> [shape: f32[1,1], index: 2, kind: input, shape index: {}]
  %s3 = inlined_call_operand.hbm [shape: f32[1,128], index: 3, kind: output, shape index: {}]
  %s4 = sld [smem:[#allocation0]]
  $region22: #{tpu_custom_call.1} parent=0
    _
  %s6 = ssub.s32 1, %s4
  %s7 = scalar_select 0, %s6, %s4
  %8 = sst [smem:[#allocation3]] %s2
  $region1: #{tpu_custom_call.1} parent=0
    #allocation4 [shape = 'u8[512]{0}', space=vmem, size = 0x400, scoped, tag = 'output window, operand 0, single buffered']
    #allocation5 [shape = 's32[1]{0}', space=sflag, size = 0x4, scoped, tag = 'scoped memory for tpu_custom_call.1']
    %9 = vsyncpa [#allocation5], 0
    // Predicated region
    $region2: #{tpu_custom_call.1} parent=1 // pred_check
      _
    $region3: #{tpu_custom_call.1} parent=1 // pred_check_branch
      %11 = sbr.rel (0) target = $region5
    $region4: #{tpu_custom_call.1} parent=1 // pred_region
      _
    $region5: #{tpu_custom_call.1} parent=1 // pred_fallthru
      _
    // Predicated region
    $region6: #{tpu_custom_call.1} parent=1 // pred_check
      _
    $region7: #{tpu_custom_call.1} parent=1 // pred_check_branch
      %13 = sbr.rel (0) target = $region9
    $region8: #{tpu_custom_call.1} parent=1 // pred_region
      _
    $region9: #{tpu_custom_call.1} parent=1 // pred_fallthru
      _
    // Predicated region
    $region10: #{tpu_custom_call.1} parent=1 // pred_check
      _
    $region11: #{tpu_custom_call.1} parent=1 // pred_check_branch
      %15 = sbr.rel (0) target = $region13
    $region12: #{tpu_custom_call.1} parent=1 // pred_region
      _
    $region13: #{tpu_custom_call.1} parent=1 // pred_fallthru
      _
    %v17 = vld [vmem:[%s0] sm:$0x3]
    %v18 = vlaneseq
    %v19 = vshrl.u32 %v18, 7
    %v20 = vadd.s32 %v19, 8
    %v21 = vlaneseq
    %v22 = vshrl.u32 %v21, 7
    %v23 = vsub.s32 0, %v22
    %v24 = vrot.slane %v17, %v23
    %vm25 = vcmp.eq.s32.totalorder %v19, %v24
    %vm26 = vcmp.eq.s32.totalorder %v20, %v24
    %v27 = vsel %vm25, 1, 0
    %v28 = vsel %vm26, 1, 0
    %v29 = vcvt.s32.f32 %v27
    %v30 = vcvt.s32.f32 %v28
    %31 = vst [vmem:[#allocation2] sm:$0xff] %v29
    %32 = vst [vmem:[#allocation2 + $0x8] sm:$0xff] %v30
    %v33 = vlaneseq
    %v34 = vshrl.u32 %v33, 7
    %v35 = vsub.s32 1, %v34
    %v36 = vrot.slane %v17, %v35
    %vm37 = vcmp.eq.s32.totalorder %v19, %v36
    %vm38 = vcmp.eq.s32.totalorder %v20, %v36
    %v39 = vsel %vm37, 1, 0
    %v40 = vsel %vm38, 1, 0
    %v41 = vcvt.s32.f32 %v39
    %v42 = vcvt.s32.f32 %v40
    %43 = vst [vmem:[#allocation2 + $0x10] sm:$0xff] %v41
    %44 = vst [vmem:[#allocation2 + $0x18] sm:$0xff] %v42
    %v45 = vld [vmem:[#allocation2] sm:$0xff]
    %v46 = vld [vmem:[#allocation2 + $0x8] sm:$0xff]
    %v47 = vld [vmem:[#allocation2 + $0x10] sm:$0xff]
    %v48 = vld [vmem:[#allocation2 + $0x18] sm:$0xff]
    %v49 = vpack.c.bf16 %v46, %v45
    %v50 = vpack.c.bf16 %v48, %v47
    %v51 = vld [vmem:[%s1] sm:$0xf]
    %v52 = vld [vmem:[%s1 + $0x4] sm:$0xf]
    %v53 = vld [vmem:[%s1 + $0x8] sm:$0xf]
    %v54 = vld [vmem:[%s1 + $0xc] sm:$0xf]
    %v55 = vld [vmem:[%s1 + $0x10] sm:$0xf]
    %v56 = vld [vmem:[%s1 + $0x14] sm:$0xf]
    %s57 = scalar_lea.vmem %s1, 24
    %v58 = vld [vmem:[%s57] sm:$0xf]
    %v59 = vld [vmem:[%s57 + $0x4] sm:$0xf]
    %v60 = vld [vmem:[%s57 + $0x8] sm:$0xf]
    %v61 = vld [vmem:[%s57 + $0xc] sm:$0xf]
    %v62 = vld [vmem:[%s57 + $0x10] sm:$0xf]
    %v63 = vld [vmem:[%s57 + $0x14] sm:$0xf]
    %v70 = vunpack.c.l.b16 %v58
    %v71 = vunpack.c.l.b16 %v59
    %v72 = vunpack.c.l.b16 %v60
    %v73 = vunpack.c.l.b16 %v61
    %v74 = vunpack.c.l.b16 %v62
    %v75 = vunpack.c.l.b16 %v63
    %v76 = vpack.c.b16 %v71, %v70
    %v77 = vpack.c.b16 %v73, %v72
    %v78 = vpack.c.b16 %v75, %v74
    %vm79 = vcmask 261120
    %v81 = vsel %vm79, %v76, 0
    %v84 = vsel %vm79, %v77, 0
    %v87 = vsel %vm79, %v78, 0
    %89 = vmatprep.subr.bf16.mxu0 0
    %90 = vmatpush1.bf16.msra.mxu0 %v49
    %91 = vmatprep.subr.bf16.mxu0 0
    %92 = vmatpush1.bf16.msra.mxu0 %v50
    %93 = vmatprep.subr.bf16.mxu0 0
    %94 = vmatpush1.bf16.msra.mxu0 0
    %95 = vmatprep.subr.bf16.mxu0 0
    %96 = vmatpush1.bf16.msra.mxu0 0
    %97 = vmatprep.subr.bf16.mxu0 0
    %98 = vmatpush1.bf16.msra.mxu0 0
    %99 = vmatprep.subr.bf16.mxu0 0
    %100 = vmatpush1.bf16.msra.mxu0 0
    %101 = vmatprep.subr.bf16.mxu0 0
    %102 = vmatpush1.bf16.msra.mxu0 0
    %103 = vmatprep.subr.bf16.mxu0 0
    %104 = vmatpush1.bf16.msra.mxu0 0
    %105 = vmatprep.subr.bf16.mxu0 0
    %106 = vmatpush1.bf16.msra.mxu0 0
    %107 = vmatprep.subr.bf16.mxu0 0
    %108 = vmatpush1.bf16.msra.mxu0 0
    %109 = vmatprep.subr.bf16.mxu0 0
    %110 = vmatpush1.bf16.msra.mxu0 0
    %111 = vmatprep.subr.bf16.mxu0 0
    %112 = vmatpush1.bf16.msra.mxu0 0
    %113 = vmatprep.subr.bf16.mxu0 0
    %114 = vmatpush1.bf16.msra.mxu0 0
    %115 = vmatprep.subr.bf16.mxu0 0
    %116 = vmatpush1.bf16.msra.mxu0 0
    %117 = vmatprep.subr.bf16.mxu0 0
    %118 = vmatpush1.bf16.msra.mxu0 0
    %119 = vmatprep.subr.bf16.mxu0 0
    %120 = vmatpush1.bf16.msra.mxu0 0
    %121 = vmatprep.mubr.bf16.mxu0 0
    %122 = vmatmul.mubr.bf16.gmra.mrb[0].mxu0 %v81
    %v123 = vpop.f32.mrb[0].mxu0
    %v124 = vadd.f32 0.0, %v123
    %v125 = vpop.f32.mrb[0].mxu0
    %v126 = vpop.f32.mrb[0].mxu0
    %v127 = vadd.f32 0.0, %v126
    %v128 = vpop.f32.mrb[0].mxu0
    %129 = vmatprep.mubr.bf16.mxu0 0
    %130 = vmatmul.mubr.bf16.gmra.mrb[0].mxu0 %v84
    %v131 = vpop.f32.mrb[0].mxu0
    %v132 = vadd.f32 0.0, %v131
    %v133 = vpop.f32.mrb[0].mxu0
    %v134 = vpop.f32.mrb[0].mxu0
    %v135 = vadd.f32 0.0, %v134
    %v136 = vpop.f32.mrb[0].mxu0
    %137 = vmatprep.mubr.bf16.mxu0 0
    %138 = vmatmul.mubr.bf16.gmra.mrb[0].mxu0 %v87
    %v139 = vpop.f32.mrb[0].mxu0
    %v140 = vadd.f32 0.0, %v139
    %v141 = vpop.f32.mrb[0].mxu0
    %v142 = vpop.f32.mrb[0].mxu0
    %v143 = vpop.f32.mrb[0].mxu0
    %144 = vdwg.mxu0
    %v151 = vunpack.c.l.b16 %v51
    %v152 = vunpack.c.l.b16 %v52
    %v153 = vunpack.c.l.b16 %v53
    %v154 = vunpack.c.l.b16 %v54
    %v155 = vunpack.c.l.b16 %v55
    %v156 = vunpack.c.l.b16 %v56
    %v157 = vpack.c.b16 %v152, %v151
    %v158 = vpack.c.b16 %v154, %v153
    %v159 = vpack.c.b16 %v156, %v155
    %v161 = vsel %vm79, %v157, 0
    %v164 = vsel %vm79, %v158, 0
    %v167 = vsel %vm79, %v159, 0
    %169 = vmatprep.subr.bf16.mxu0 0
    %170 = vmatpush1.bf16.msra.mxu0 %v49
    %171 = vmatprep.subr.bf16.mxu0 0
    %172 = vmatpush1.bf16.msra.mxu0 %v50
    %173 = vmatprep.subr.bf16.mxu0 0
    %174 = vmatpush1.bf16.msra.mxu0 0
    %175 = vmatprep.subr.bf16.mxu0 0
    %176 = vmatpush1.bf16.msra.mxu0 0
    %177 = vmatprep.subr.bf16.mxu0 0
    %178 = vmatpush1.bf16.msra.mxu0 0
    %179 = vmatprep.subr.bf16.mxu0 0
    %180 = vmatpush1.bf16.msra.mxu0 0
    %181 = vmatprep.subr.bf16.mxu0 0
    %182 = vmatpush1.bf16.msra.mxu0 0
    %183 = vmatprep.subr.bf16.mxu0 0
    %184 = vmatpush1.bf16.msra.mxu0 0
    %185 = vmatprep.subr.bf16.mxu0 0
    %186 = vmatpush1.bf16.msra.mxu0 0
    %187 = vmatprep.subr.bf16.mxu0 0
    %188 = vmatpush1.bf16.msra.mxu0 0
    %189 = vmatprep.subr.bf16.mxu0 0
    %190 = vmatpush1.bf16.msra.mxu0 0
    %191 = vmatprep.subr.bf16.mxu0 0
    %192 = vmatpush1.bf16.msra.mxu0 0
    %193 = vmatprep.subr.bf16.mxu0 0
    %194 = vmatpush1.bf16.msra.mxu0 0
    %195 = vmatprep.subr.bf16.mxu0 0
    %196 = vmatpush1.bf16.msra.mxu0 0
    %197 = vmatprep.subr.bf16.mxu0 0
    %198 = vmatpush1.bf16.msra.mxu0 0
    %199 = vmatprep.subr.bf16.mxu0 0
    %200 = vmatpush1.bf16.msra.mxu0 0
    %201 = vmatprep.mubr.bf16.mxu0 0
    %202 = vmatmul.mubr.bf16.gmra.mrb[0].mxu0 %v161
    %v203 = vpop.f32.mrb[0].mxu0
    %v204 = vadd.f32 %v124, %v203
    %v205 = vpop.f32.mrb[0].mxu0
    %v206 = vpop.f32.mrb[0].mxu0
    %v207 = vadd.f32 %v127, %v206
    %v208 = vpop.f32.mrb[0].mxu0
    %209 = vmatprep.mubr.bf16.mxu0 0
    %210 = vmatmul.mubr.bf16.gmra.mrb[0].mxu0 %v164
    %v211 = vpop.f32.mrb[0].mxu0
    %v212 = vadd.f32 %v132, %v211
    %v213 = vpop.f32.mrb[0].mxu0
    %v214 = vpop.f32.mrb[0].mxu0
    %v215 = vadd.f32 %v135, %v214
    %v216 = vpop.f32.mrb[0].mxu0
    %217 = vmatprep.mubr.bf16.mxu0 0
    %218 = vmatmul.mubr.bf16.gmra.mrb[0].mxu0 %v167
    %v219 = vpop.f32.mrb[0].mxu0
    %v220 = vadd.f32 %v140, %v219
    %v221 = vpop.f32.mrb[0].mxu0
    %v222 = vpop.f32.mrb[0].mxu0
    %v223 = vpop.f32.mrb[0].mxu0
    %224 = vdwg.mxu0
    %v225 = vmul.f32 %v204, %v204
    %v226 = vmul.f32 %v207, %v207
    %v227 = vmul.f32 %v212, %v212
    %v228 = vmul.f32 %v215, %v215
    %v229 = vadd.f32 %v225, %v226
    %v230 = vadd.f32 %v229, %v227
    %v231 = vadd.f32 %v230, %v228
    %v232 = vrot.slane %v231, 4
    %v233 = vadd.f32 %v231, %v232
    %v234 = vrot.slane %v233, 2
    %v235 = vadd.f32 %v233, %v234
    %v236 = vrot.slane %v235, 1
    %v237 = vadd.f32 %v235, %v236
    %v238 = vsub.f32 %v237, %v220
    %v239 = vmul.f32 %v238, 0.5
    %v241 = vrot.slane %v239, 7
    %v243 = vadd.f32 %v220, %v241
    %s244 = sld [smem:[#allocation3]]
    %v245 = vstv %s244
    %v246 = vadd.f32 %v243, %v245
    %247 = vst [vmem:[#allocation4 - $0x1] sm:$0x2] %v246
    // Predicated region
    $region14: #{tpu_custom_call.1} parent=1 // pred_check
      _
    $region15: #{tpu_custom_call.1} parent=1 // pred_check_branch
      %249 = sbr.rel (0) target = $region17
    $region16: #{tpu_custom_call.1} parent=1 // pred_region
      %s251 = ssub.s32 16, 16
      %252 = vsyncadd [#allocation5], %s251
      %s254 = sshll.u32 [#allocation4], 4
      %s255 = int_to_ptr.vmem [resolvable:$true] %s254
      %257 = dma.vmem_to_hbm [thread:$0]  %s255, 16, %s3, [#allocation5]
    $region17: #{tpu_custom_call.1} parent=1 // pred_fallthru
      _
    // Predicated region
    $region18: #{tpu_custom_call.1} parent=1 // pred_check
      _
    $region19: #{tpu_custom_call.1} parent=1 // pred_check_branch
      %259 = sbr.rel (0) target = $region21
    $region20: #{tpu_custom_call.1} parent=1 // pred_region
      %260 = dma.done [#allocation5], 16
    $region21: #{tpu_custom_call.1} parent=1 // pred_fallthru
      _
    %261 = vsyncpa [#allocation5], 1

</llo_original>
